<compile_context>
chip_gen: v7x
topology: tpu7x:2x2x1
jax: 0.10.0
libtpu: 0.0.40
codegen_flags: <defaults>
</compile_context>

<pallas_src>
import jax
import jax.numpy as jnp
from jax.experimental import pallas as pl
from jax.experimental.pallas import tpu as pltpu

NUM_FEATURES = 32                     # maxFeaturesEnumVal() + 1
LANES = 128
DEFAULT_MAX_TILE_ROWS = 8192          # ~8 MiB HBM / ~16 MiB VMEM per grid step


def _cdiv(a, b):
    return -(-a // b)


def _round_up(a, m):
    return _cdiv(a, m) * m


def _choose_tiling(batch, max_tile_rows, sublane):
    """Pick (tile_rows, num_tiles) with no batch padding.

    tile_rows is either the full batch (single block) or a multiple of the
    sublane packing, so the (8,128) BlockSpec constraint is always satisfied;
    the last block may be partial (OOB rows are read-garbage / write-dropped,
    which is safe for this row-wise op).  When more than one tile is used the
    count is nudged to an even number so v7x's two TensorCores stay balanced.
    """
    max_tile_rows = max(sublane, (max_tile_rows // sublane) * sublane)
    if batch <= max_tile_rows:
        return batch, 1               # single full-dim block — always legal
    tile = max_tile_rows
    num = _cdiv(batch, tile)
    if num % 2 == 1:                  # balance across v7x's two TCs
        cand = _round_up(_cdiv(batch, num + 1), sublane)
        if _cdiv(batch, cand) == num + 1:   # no fully-empty trailing block
            tile, num = cand, num + 1
    return tile, num


def footsie_kernel(x_ref, w_ref, o_ref):
    # x_ref: (tile, 32) raw feature rows
    # w_ref: (32, 128) — the single weight row broadcast across all 128 lanes
    # o_ref: (tile, 1) probabilities
    logits = jnp.dot(x_ref[...], w_ref[...],
                     preferred_element_type=jnp.float32)      # (tile, 128)
    # Every lane of `logits` carries the same per-row logit; sigmoid runs on
    # the EUP slot (exp + exact reciprocal) and is hidden under the DMA.
    probs = pl.reciprocal(1.0 + jnp.exp(-logits))             # exact sigmoid
    o_ref[...] = probs[:, :1].astype(o_ref.dtype)


def footsie_forward(x, w, *, max_tile_rows=DEFAULT_MAX_TILE_ROWS, out_dtype=None):
    """sigmoid(x @ w.T) for FootsieModel (no bias).

    x: [B, NUM_FEATURES]   (f32; bf16 also accepted — no wrapper cast)
    w: [1, NUM_FEATURES]   (nn.Linear weight layout)
    returns: [B, 1]
    """
    B, F = x.shape
    assert F == NUM_FEATURES, (F, NUM_FEATURES)
    assert w.shape == (1, NUM_FEATURES), w.shape
    out_dtype = x.dtype if out_dtype is None else out_dtype

    sublane = max(8, 32 // jnp.dtype(x.dtype).itemsize)       # 8/16/32 for f32/bf16/i8
    tile, num_tiles = _choose_tiling(B, max_tile_rows, sublane)

    # Tiny one-time weight prep (16 KiB): broadcast w across the lane dim so
    # the per-tile dot is a standard MXU matmul; stays resident in VMEM.
    w_mat = jnp.broadcast_to(
        w.reshape(NUM_FEATURES, 1), (NUM_FEATURES, LANES)
    ).astype(x.dtype)

    cost = pl.CostEstimate(
        flops=2 * B * NUM_FEATURES,
        transcendentals=B,
        bytes_accessed=(x.size * x.dtype.itemsize
                        + B * jnp.dtype(out_dtype).itemsize
                        + w_mat.size * w_mat.dtype.itemsize),
    )

    return pl.pallas_call(
        footsie_kernel,
        out_shape=jax.ShapeDtypeStruct((B, 1), out_dtype),
        grid=(num_tiles,),
        in_specs=[
            pl.BlockSpec((tile, NUM_FEATURES), lambda i: (i, 0)),
            pl.BlockSpec((NUM_FEATURES, LANES), lambda i: (0, 0)),  # resident
        ],
        out_specs=pl.BlockSpec((tile, 1), lambda i: (i, 0)),
        compiler_params=pltpu.CompilerParams(
            dimension_semantics=("parallel",),
            vmem_limit_bytes=32 * 1024 * 1024,
        ),
        cost_estimate=cost,
    )(x, w_mat)


def reference_forward(x, w):
    return jax.nn.sigmoid(x @ w.T)


if __name__ == "__main__":
    key = jax.random.PRNGKey(0)
    kx, kw, kx2 = jax.random.split(key, 3)

    # Deterministic init mimicking nn.Linear default U(-1/sqrt(F), 1/sqrt(F)).
    bound = 1.0 / jnp.sqrt(float(NUM_FEATURES))
    w = jax.random.uniform(
        kw, (1, NUM_FEATURES), minval=-bound, maxval=bound, dtype=jnp.float32
    )

    # Small case (matches the module's toy usage): single full-dim block.
    batch = 8
    x = jax.random.normal(kx, (batch, NUM_FEATURES), dtype=jnp.float32)
    out = jax.block_until_ready(footsie_forward(x, w))
    ref = reference_forward(x, w)
    assert out.shape == (batch, 1), out.shape
    assert jnp.allclose(out, ref, atol=5e-5, rtol=0), float(
        jnp.max(jnp.abs(out - ref))
    )

    # Multi-tile path: non-divisible batch -> partial last block, odd->even
    # tile-count rebalance, no padding anywhere.  Kept modest in size.
    batch2 = 10000
    x2 = jax.random.normal(kx2, (batch2, NUM_FEATURES), dtype=jnp.float32)
    out2 = jax.block_until_ready(footsie_forward(x2, w, max_tile_rows=2048))
    ref2 = reference_forward(x2, w)
    assert out2.shape == (batch2, 1), out2.shape
    assert jnp.allclose(out2, ref2, atol=5e-5, rtol=0), float(
        jnp.max(jnp.abs(out2 - ref2))
    )

    print("KERNEL_OK")
</pallas_src>

<mosaic_0001>
module attributes {stable_mosaic.version = 11 : i64} {
  func.func @footsie_kernel(%arg0: i32, %arg1: memref<8x32xf32, #tpu.memory_space<vmem>>, %arg2: memref<32x128xf32, #tpu.memory_space<vmem>>, %arg3: memref<8x1xf32, #tpu.memory_space<vmem>>) attributes {dimension_semantics = [#tpu.dimension_semantics<parallel>], iteration_bounds = array<i64: 1>, scalar_prefetch = 0 : i64, scratch_operands = 0 : i64, tpu.core_type = #tpu.core_type<tc>, window_params = [{transform_indices = @transform_0, window_bounds = array<i64: 8, 32>}, {pipeline_mode = #tpu.pipeline_mode<synchronous>, transform_indices = @transform_1, window_bounds = array<i64: 32, 128>}, {transform_indices = @transform_2, window_bounds = array<i64: 8, 1>}]} {
    %c0 = arith.constant 0 : index
    %c0_0 = arith.constant 0 : index
    %0 = vector.load %arg1[%c0, %c0_0] : memref<8x32xf32, #tpu.memory_space<vmem>>, vector<8x32xf32>
    %c0_1 = arith.constant 0 : index
    %c0_2 = arith.constant 0 : index
    %1 = vector.load %arg2[%c0_1, %c0_2] : memref<32x128xf32, #tpu.memory_space<vmem>>, vector<32x128xf32>
    %cst = arith.constant dense<0.000000e+00> : vector<8x128xf32>
    %2 = tpu.matmul %0, %1, %cst {dimension_numbers = #tpu.dot_dimension_numbers<[1], [0], [0], [1], [0, 0, 1, 1], [], []>} : vector<8x32xf32>, vector<32x128xf32>, vector<8x128xf32> -> vector<8x128xf32>
    %cst_3 = arith.constant 0.000000e+00 : f32
    %3 = vector.broadcast %cst_3 : f32 to vector<8x128xf32>
    %4 = arith.subf %3, %2 : vector<8x128xf32>
    %5 = math.exp %4 : vector<8x128xf32>
    %cst_4 = arith.constant 1.000000e+00 : f32
    %6 = vector.broadcast %cst_4 : f32 to vector<8x128xf32>
    %7 = arith.addf %6, %5 : vector<8x128xf32>
    %8 = tpu.reciprocal %7 : vector<8x128xf32> -> vector<8x128xf32>
    %9 = vector.extract_strided_slice %8 {offsets = [0, 0], sizes = [8, 1], strides = [1, 1]} : vector<8x128xf32> to vector<8x1xf32>
    %c0_5 = arith.constant 0 : index
    %c0_6 = arith.constant 0 : index
    %10 = vector.load %arg3[%c0_5, %c0_6] : memref<8x1xf32, #tpu.memory_space<vmem>>, vector<8x1xf32>
    tpu.vector_store %arg3[%c0_5, %c0_6], %9 {strides = array<i32>} : memref<8x1xf32, #tpu.memory_space<vmem>>, vector<8x1xf32>,
    return
  }
  func.func @transform_0(%arg0: i32) -> (i32, i32) {
    %c0_i32 = arith.constant 0 : i32
    %c0_i32_0 = arith.constant 0 : i32
    return %arg0, %c0_i32 : i32, i32
  }
  func.func @transform_1(%arg0: i32) -> (i32, i32) {
    %c0_i32 = arith.constant 0 : i32
    %c0_i32_0 = arith.constant 0 : i32
    %c0_i32_1 = arith.constant 0 : i32
    return %c0_i32, %c0_i32_0 : i32, i32
  }
  func.func @transform_2(%arg0: i32) -> (i32, i32) {
    %c0_i32 = arith.constant 0 : i32
    %c0_i32_0 = arith.constant 0 : i32
    return %arg0, %c0_i32 : i32, i32
  }
}

</mosaic_0001>

<llo_original>
// kernel: tpu_custom_call.1
$region0: #{tpu_custom_call.1}
  #allocation0 [shape = 'u32[]', space=smem, size = 0x4, offset = 0x4, fixed_abs, tag = 'smem constant byte address 0x4 - core index']
  #allocation1 [shape = 'u32[144,128]{1,0:T(1,128)}', space=vmem, size = 0x12000, scoped, tag = 'internal scratch']
  %s0 = inlined_call_operand.hbm [shape: f32[8,32], index: 0, kind: input, shape index: {}]
  %s1 = inlined_call_operand.hbm [shape: f32[32,128], index: 1, kind: input, shape index: {}]
  %s2 = inlined_call_operand.vmem [shape: f32[8,1], index: 2, kind: output, shape index: {}]
  %s3 = sld [smem:[#allocation0]]
  $region26: #{tpu_custom_call.1} parent=0
    _
  %s5 = ssub.s32 1, %s3
  %s6 = scalar_select 0, %s5, %s3
  $region1: #{tpu_custom_call.1} parent=0
    #allocation2 [shape = 'u8[4096]{0}', space=vmem, size = 0x1000, scoped, tag = 'input window, operand 0, single buffered']
    #allocation3 [shape = 's32[1]{0}', space=sflag, size = 0x4, scoped, tag = 'scoped memory for tpu_custom_call.1']
    #allocation4 [shape = 'u8[16384]{0}', space=vmem, size = 0x4000, scoped, tag = 'input window, operand 1, single buffered']
    #allocation5 [shape = 's32[1]{0}', space=sflag, size = 0x4, scoped, tag = 'scoped memory for tpu_custom_call.1']
    %7 = vsyncpa [#allocation3], 0
    %8 = vsyncpa [#allocation5], 0
    // Predicated region
    $region2: #{tpu_custom_call.1} parent=1 // pred_check
      _
    $region3: #{tpu_custom_call.1} parent=1 // pred_check_branch
      %10 = sbr.rel (0) target = $region5
    $region4: #{tpu_custom_call.1} parent=1 // pred_region
      %s12 = ssub.s32 128, 128
      %13 = vsyncadd [#allocation3], %s12
      %s15 = sshll.u32 [#allocation2], 4
      %s16 = int_to_ptr.vmem [resolvable:$true] %s15
      %18 = dma.hbm_to_vmem [thread:$0]  %s0, 128, %s16, [#allocation3]
    $region5: #{tpu_custom_call.1} parent=1 // pred_fallthru
      _
    // Predicated region
    $region6: #{tpu_custom_call.1} parent=1 // pred_check
      _
    $region7: #{tpu_custom_call.1} parent=1 // pred_check_branch
      %20 = sbr.rel (0) target = $region9
    $region8: #{tpu_custom_call.1} parent=1 // pred_region
      %s22 = ssub.s32 512, 512
      %23 = vsyncadd [#allocation5], %s22
      %s24 = sshll.u32 [#allocation4], 4
      %s25 = int_to_ptr.vmem [resolvable:$true] %s24
      %30 = dma.hbm_to_vmem [thread:$0]  %s1, 512, %s25, [#allocation5], 128, 128, 8
    $region9: #{tpu_custom_call.1} parent=1 // pred_fallthru
      _
    // Predicated region
    $region10: #{tpu_custom_call.1} parent=1 // pred_check
      _
    $region11: #{tpu_custom_call.1} parent=1 // pred_check_branch
      %32 = sbr.rel (0) target = $region13
    $region12: #{tpu_custom_call.1} parent=1 // pred_region
      %33 = dma.done [#allocation3], 128
    $region13: #{tpu_custom_call.1} parent=1 // pred_fallthru
      _
    // Predicated region
    $region14: #{tpu_custom_call.1} parent=1 // pred_check
      _
    $region15: #{tpu_custom_call.1} parent=1 // pred_check_branch
      %35 = sbr.rel (0) target = $region17
    $region16: #{tpu_custom_call.1} parent=1 // pred_region
      %36 = dma.done [#allocation5], 512
    $region17: #{tpu_custom_call.1} parent=1 // pred_fallthru
      _
    %v37 = vld [vmem:[#allocation2] sm:$0xff]
    %v38 = vld [vmem:[#allocation4] sm:$0xff]
    %v39 = vld [vmem:[#allocation4 + $0x8] sm:$0xff]
    %v40 = vld [vmem:[#allocation4 + $0x10] sm:$0xff]
    %v41 = vld [vmem:[#allocation4 + $0x18] sm:$0xff]
    %vm42 = vcmask 261120
    %v44 = vsel %vm42, %v37, 0
    %46 = vmatprep.subr.mxu0 0.0
    %47 = vmatpush1.msra.mxu0 %v38
    %48 = vmatprep.subr.mxu0 0.0
    %49 = vmatpush1.msra.mxu0 %v39
    %50 = vmatprep.subr.mxu0 0.0
    %51 = vmatpush1.msra.mxu0 %v40
    %52 = vmatprep.subr.mxu0 0.0
    %53 = vmatpush1.msra.mxu0 %v41
    %54 = vmatprep.subr.mxu0 0.0
    %55 = vmatpush1.msra.mxu0 0.0
    %56 = vmatprep.subr.mxu0 0.0
    %57 = vmatpush1.msra.mxu0 0.0
    %58 = vmatprep.subr.mxu0 0.0
    %59 = vmatpush1.msra.mxu0 0.0
    %60 = vmatprep.subr.mxu0 0.0
    %61 = vmatpush1.msra.mxu0 0.0
    %62 = vmatprep.subr.mxu0 0.0
    %63 = vmatpush1.msra.mxu0 0.0
    %64 = vmatprep.subr.mxu0 0.0
    %65 = vmatpush1.msra.mxu0 0.0
    %66 = vmatprep.subr.mxu0 0.0
    %67 = vmatpush1.msra.mxu0 0.0
    %68 = vmatprep.subr.mxu0 0.0
    %69 = vmatpush1.msra.mxu0 0.0
    %70 = vmatprep.subr.mxu0 0.0
    %71 = vmatpush1.msra.mxu0 0.0
    %72 = vmatprep.subr.mxu0 0.0
    %73 = vmatpush1.msra.mxu0 0.0
    %74 = vmatprep.subr.mxu0 0.0
    %75 = vmatpush1.msra.mxu0 0.0
    %76 = vmatprep.subr.mxu0 0.0
    %77 = vmatpush1.msra.mxu0 0.0
    %78 = vmatprep.subr.mxu0 0.0
    %79 = vmatpush1.msra.mxu0 0.0
    %80 = vmatprep.subr.mxu0 0.0
    %81 = vmatpush1.msra.mxu0 0.0
    %82 = vmatprep.subr.mxu0 0.0
    %83 = vmatpush1.msra.mxu0 0.0
    %84 = vmatprep.subr.mxu0 0.0
    %85 = vmatpush1.msra.mxu0 0.0
    %86 = vmatprep.subr.mxu0 0.0
    %87 = vmatpush1.msra.mxu0 0.0
    %88 = vmatprep.subr.mxu0 0.0
    %89 = vmatpush1.msra.mxu0 0.0
    %90 = vmatprep.subr.mxu0 0.0
    %91 = vmatpush1.msra.mxu0 0.0
    %92 = vmatprep.subr.mxu0 0.0
    %93 = vmatpush1.msra.mxu0 0.0
    %94 = vmatprep.subr.mxu0 0.0
    %95 = vmatpush1.msra.mxu0 0.0
    %96 = vmatprep.subr.mxu0 0.0
    %97 = vmatpush1.msra.mxu0 0.0
    %98 = vmatprep.subr.mxu0 0.0
    %99 = vmatpush1.msra.mxu0 0.0
    %100 = vmatprep.subr.mxu0 0.0
    %101 = vmatpush1.msra.mxu0 0.0
    %102 = vmatprep.subr.mxu0 0.0
    %103 = vmatpush1.msra.mxu0 0.0
    %104 = vmatprep.subr.mxu0 0.0
    %105 = vmatpush1.msra.mxu0 0.0
    %106 = vmatprep.subr.mxu0 0.0
    %107 = vmatpush1.msra.mxu0 0.0
    %108 = vmatprep.subr.mxu0 0.0
    %109 = vmatpush1.msra.mxu0 0.0
    %110 = vmatprep.mubr.f32.mxu0 0.0
    %111 = vmatmul.mubr.f32.gmra.mrb[0].mxu0 %v44
    %v112 = vpop.f32.mrb[0].mxu0
    %v113 = vadd.f32 0.0, %v112
    %v114 = vpop.f32.mrb[0].mxu0
    %115 = vdwg.mxu0
    %v116 = vsub.f32 0.0, %v113
    %v117 = vmul.f32 %v116, 1.442695
    %v118 = vpow.pop %v117
    %v119 = vadd.f32 %v118, 1.0
    %v120 = vrcp.pop %v119
    %vm121 = vcmask 7168
    %122 = vst.msk [vmem:[%s2] sm:$0xff] %vm121, %v120
    // Predicated region
    $region18: #{tpu_custom_call.1} parent=1 // pred_check
      _
    $region19: #{tpu_custom_call.1} parent=1 // pred_check_branch
      %124 = sbr.rel (0) target = $region21
    $region20: #{tpu_custom_call.1} parent=1 // pred_region
      _
    $region21: #{tpu_custom_call.1} parent=1 // pred_fallthru
      _
    // Predicated region
    $region22: #{tpu_custom_call.1} parent=1 // pred_check
      _
    $region23: #{tpu_custom_call.1} parent=1 // pred_check_branch
      %126 = sbr.rel (0) target = $region25
    $region24: #{tpu_custom_call.1} parent=1 // pred_region
      _
    $region25: #{tpu_custom_call.1} parent=1 // pred_fallthru
      _
    %127 = vsyncpa [#allocation3], 1
    %128 = vsyncpa [#allocation5], 1

</llo_original>
